<compile_context>
chip_gen: v5e
topology: v5e:2x2
jax: 0.10.0
libtpu: 0.0.40
codegen_flags: <defaults>
</compile_context>

<pallas_src>
import functools

import jax
import jax.numpy as jnp
from jax import lax
from jax.experimental import pallas as pl
from jax.experimental.pallas import tpu as pltpu


# ----------------------------- fused kernel ---------------------------------
def _lie_lstm_kernel(x2d_ref, wih_ref, whh_ref, bias_ref, wall_ref, bfc_ref,
                     out_ref, *, seq_len, batch, hidden_dim, gesture_size):
    S, B, H, G = seq_len, batch, hidden_dim, gesture_size

    # ---- Hoisted input projection: one matmul for ALL timesteps. -----------
    # (S*B, I) @ (I, 4H) + (1, 4H) -> (S*B, 4H); row s*B + b is x[s, b].
    xg = (jnp.dot(x2d_ref[...], wih_ref[...],
                  preferred_element_type=jnp.float32) + bias_ref[...])

    whh = whh_ref[...]                    # (H, 4H)   recurrent weight
    wall = wall_ref[...]                  # (H, S*B*G) dense fused FC weight

    h = jnp.zeros((B, H), jnp.float32)
    c = jnp.zeros((B, H), jnp.float32)
    # Per-output-row FC accumulators (torch view(B, -1) semantics), in vregs.
    acc_rows = [jnp.zeros((1, G), jnp.float32) for _ in range(B)]

    # ---- Serial recurrence, fully unrolled (static S), FC folded in. -------
    for s in range(S):
        gates = xg[s * B:(s + 1) * B, :] + jnp.dot(
            h, whh, preferred_element_type=jnp.float32)      # (B, 4H)

        sg = jax.nn.sigmoid(gates)        # one full-width EUP op (i, f, o)
        i_g = sg[:, 0 * H:1 * H]
        f_g = sg[:, 1 * H:2 * H]
        o_g = sg[:, 3 * H:4 * H]
        g_g = jnp.tanh(gates[:, 2 * H:3 * H])

        c = f_g * c + i_g * g_g
        h = o_g * jnp.tanh(c)

        # Fused FC contribution of this step.  wall column block m = s*B + b
        # holds w_fc[:, t*H:(t+1)*H].T with t = m % S; the result row/block
        # (b, m) feeds output row m // S.  Off the serial h/c chain, so this
        # MXU push overlaps the next step's sigmoid/tanh.
        p = jnp.dot(h, wall, preferred_element_type=jnp.float32)  # (B, S*B*G)
        for b in range(B):
            m = s * B + b
            acc_rows[m // S] = acc_rows[m // S] + p[b:b + 1, m * G:(m + 1) * G]

    # ---- Single lane-dense store of the full (B, G) result. ----------------
    result = jnp.concatenate(acc_rows, axis=0) + bfc_ref[...]     # (B, G)
    out_ref[...] = result


# ------------------------------ wrappers -------------------------------------
def prepare_params(params, seq_len, batch):
    """One-time weight preprocessing (kept OUT of the forward path)."""
    H = params["w_hh"].shape[1]
    G = params["w_fc"].shape[0]
    S, B = seq_len, batch

    # w_fc (G, S*H) -> per-time blocks (G, S, H); block t multiplies
    # flat[:, t*H:(t+1)*H] of torch's lstm_out.view(B, -1).
    wfc_t = params["w_fc"].reshape(G, S, H)
    # Dense fused FC weight: column block m (width G) = w_fc block (m % S).T,
    # laid out for flat position m = s*B + b of the (S, B, H) hidden buffer.
    wall = jnp.concatenate(
        [jnp.transpose(wfc_t[:, m % S, :]) for m in range(S * B)],
        axis=1)                                                   # (H, S*B*G)

    return {
        "wih_t": jnp.transpose(params["w_ih"]),                   # (I, 4H)
        "whh_t": jnp.transpose(params["w_hh"]),                   # (H, 4H)
        "bias": (params["b_ih"] + params["b_hh"]).reshape(1, -1),  # (1, 4H)
        "wall": wall,                                             # (H, S*B*G)
        "bfc": params["b_fc"].reshape(1, G),                      # (1, G)
    }


def lie_lstm_forward(x, prepped):
    """Exact LieLSTM forward: x (S, B, I) -> (B, gesture_size)."""
    S, B, I = x.shape
    H = prepped["whh_t"].shape[0]
    G = prepped["bfc"].shape[1]

    x2d = x.reshape(S * B, I)             # row-major: x2d[s*B + b] == x[s, b]

    kernel = functools.partial(_lie_lstm_kernel, seq_len=S, batch=B,
                               hidden_dim=H, gesture_size=G)
    vmem_specs = [pl.BlockSpec(memory_space=pltpu.MemorySpace.VMEM)
                  for _ in range(6)]

    flops = (2 * S * B * I * 4 * H            # hoisted input projection
             + 2 * S * B * H * 4 * H          # recurrent matmuls
             + 2 * S * B * H * (S * B * G))   # fused FC matmuls
    transcendentals = S * B * 6 * H           # sigmoid(4H) + 2*tanh(H) / step
    bytes_accessed = 4 * (x2d.size + prepped["wih_t"].size
                          + prepped["whh_t"].size + prepped["bias"].size
                          + prepped["wall"].size + prepped["bfc"].size
                          + B * G)

    return pl.pallas_call(
        kernel,
        out_shape=jax.ShapeDtypeStruct((B, G), jnp.float32),
        in_specs=vmem_specs,
        out_specs=pl.BlockSpec(memory_space=pltpu.MemorySpace.VMEM),
        cost_estimate=pl.CostEstimate(flops=flops,
                                      transcendentals=transcendentals,
                                      bytes_accessed=bytes_accessed),
    )(x2d, prepped["wih_t"], prepped["whh_t"], prepped["bias"],
      prepped["wall"], prepped["bfc"])


# ------------------------- pure-JAX reference --------------------------------
def lie_lstm_reference(x, params):
    S, B, I = x.shape
    H = params["w_hh"].shape[1]
    w_ih_t = params["w_ih"].T
    w_hh_t = params["w_hh"].T
    bias = params["b_ih"] + params["b_hh"]

    def step(carry, x_t):
        h, c = carry
        gates = x_t @ w_ih_t + h @ w_hh_t + bias
        i = jax.nn.sigmoid(gates[:, 0 * H:1 * H])
        f = jax.nn.sigmoid(gates[:, 1 * H:2 * H])
        g = jnp.tanh(gates[:, 2 * H:3 * H])
        o = jax.nn.sigmoid(gates[:, 3 * H:4 * H])
        c = f * c + i * g
        h = o * jnp.tanh(c)
        return (h, c), h

    h0 = jnp.zeros((B, H), jnp.float32)
    c0 = jnp.zeros((B, H), jnp.float32)
    _, hs = lax.scan(step, (h0, c0), x)               # (S, B, H)
    flat = jnp.reshape(hs, (B, S * H))                # torch's view(B, -1)
    return flat @ params["w_fc"].T + params["b_fc"]


# --------------------------------- main ---------------------------------------
if __name__ == "__main__":
    hidden_dim, input_size, gesture_size, seq_len, batch = 32, 4, 8, 8, 2

    key = jax.random.PRNGKey(0)
    k = jax.random.split(key, 7)
    scale = 1.0 / jnp.sqrt(hidden_dim)

    params = {
        # nn.LSTM parameter shapes (gate order i, f, g, o)
        "w_ih": jax.random.uniform(k[0], (4 * hidden_dim, input_size),
                                   jnp.float32, -scale, scale),
        "w_hh": jax.random.uniform(k[1], (4 * hidden_dim, hidden_dim),
                                   jnp.float32, -scale, scale),
        "b_ih": jax.random.uniform(k[2], (4 * hidden_dim,),
                                   jnp.float32, -scale, scale),
        "b_hh": jax.random.uniform(k[3], (4 * hidden_dim,),
                                   jnp.float32, -scale, scale),
        # nn.Linear(hidden_dim * seq_len, gesture_size)
        "w_fc": jax.random.uniform(k[4], (gesture_size, hidden_dim * seq_len),
                                   jnp.float32, -scale, scale),
        "b_fc": jax.random.uniform(k[5], (gesture_size,),
                                   jnp.float32, -scale, scale),
    }

    x = jax.random.normal(k[6], (seq_len, batch, input_size), jnp.float32)

    prepped = prepare_params(params, seq_len, batch)  # one-time weight prep
    forward = jax.jit(lie_lstm_forward)

    out = forward(x, prepped)
    out = jax.block_until_ready(out)

    ref = lie_lstm_reference(x, params)
    assert out.shape == (batch, gesture_size)
    assert jnp.allclose(out, ref, atol=1e-5, rtol=1e-5), (
        "mismatch vs reference")

    print("KERNEL_OK")
</pallas_src>

<mosaic_0001>
module attributes {stable_mosaic.version = 11 : i64} {
  func.func @_lie_lstm_kernel(%arg0: memref<16x4xf32, #tpu.memory_space<vmem>>, %arg1: memref<4x128xf32, #tpu.memory_space<vmem>>, %arg2: memref<32x128xf32, #tpu.memory_space<vmem>>, %arg3: memref<1x128xf32, #tpu.memory_space<vmem>>, %arg4: memref<32x128xf32, #tpu.memory_space<vmem>>, %arg5: memref<1x8xf32, #tpu.memory_space<vmem>>, %arg6: memref<2x8xf32, #tpu.memory_space<vmem>>) attributes {dimension_semantics = [], scalar_prefetch = 0 : i64, scratch_operands = 0 : i64, tpu.core_type = #tpu.core_type<tc>} {
    %c0 = arith.constant 0 : index
    %c0_0 = arith.constant 0 : index
    %0 = vector.load %arg0[%c0, %c0_0] : memref<16x4xf32, #tpu.memory_space<vmem>>, vector<16x4xf32>
    %c0_1 = arith.constant 0 : index
    %c0_2 = arith.constant 0 : index
    %1 = vector.load %arg1[%c0_1, %c0_2] : memref<4x128xf32, #tpu.memory_space<vmem>>, vector<4x128xf32>
    %cst = arith.constant dense<0.000000e+00> : vector<16x128xf32>
    %2 = tpu.matmul %0, %1, %cst {dimension_numbers = #tpu.dot_dimension_numbers<[1], [0], [0], [1], [0, 0, 1, 1], [], []>} : vector<16x4xf32>, vector<4x128xf32>, vector<16x128xf32> -> vector<16x128xf32>
    %c0_3 = arith.constant 0 : index
    %c0_4 = arith.constant 0 : index
    %3 = vector.load %arg3[%c0_3, %c0_4] : memref<1x128xf32, #tpu.memory_space<vmem>>, vector<1x128xf32>
    %4 = vector.broadcast %3 : vector<1x128xf32> to vector<16x128xf32>
    %5 = arith.addf %2, %4 : vector<16x128xf32>
    %c0_5 = arith.constant 0 : index
    %c0_6 = arith.constant 0 : index
    %6 = vector.load %arg2[%c0_5, %c0_6] : memref<32x128xf32, #tpu.memory_space<vmem>>, vector<32x128xf32>
    %c0_7 = arith.constant 0 : index
    %c0_8 = arith.constant 0 : index
    %7 = vector.load %arg4[%c0_7, %c0_8] : memref<32x128xf32, #tpu.memory_space<vmem>>, vector<32x128xf32>
    %cst_9 = arith.constant 0.000000e+00 : f32
    %8 = vector.broadcast %cst_9 : f32 to vector<2x32xf32>
    %cst_10 = arith.constant 0.000000e+00 : f32
    %9 = vector.broadcast %cst_10 : f32 to vector<2x32xf32>
    %cst_11 = arith.constant 0.000000e+00 : f32
    %10 = vector.broadcast %cst_11 : f32 to vector<1x8xf32>
    %cst_12 = arith.constant 0.000000e+00 : f32
    %11 = vector.broadcast %cst_12 : f32 to vector<1x8xf32>
    %12 = vector.extract_strided_slice %5 {offsets = [0, 0], sizes = [2, 128], strides = [1, 1]} : vector<16x128xf32> to vector<2x128xf32>
    %cst_13 = arith.constant dense<0.000000e+00> : vector<2x128xf32>
    %13 = tpu.matmul %8, %6, %cst_13 {dimension_numbers = #tpu.dot_dimension_numbers<[1], [0], [0], [1], [0, 0, 1, 1], [], []>} : vector<2x32xf32>, vector<32x128xf32>, vector<2x128xf32> -> vector<2x128xf32>
    %14 = arith.addf %12, %13 : vector<2x128xf32>
    %15 = arith.negf %14 : vector<2x128xf32>
    %16 = math.exp %15 : vector<2x128xf32>
    %cst_14 = arith.constant 1.000000e+00 : f32
    %17 = vector.broadcast %cst_14 : f32 to vector<2x128xf32>
    %18 = arith.addf %17, %16 : vector<2x128xf32>
    %19 = arith.divf %17, %18 : vector<2x128xf32>
    %20 = vector.extract_strided_slice %19 {offsets = [0, 0], sizes = [2, 32], strides = [1, 1]} : vector<2x128xf32> to vector<2x32xf32>
    %21 = vector.extract_strided_slice %19 {offsets = [0, 32], sizes = [2, 32], strides = [1, 1]} : vector<2x128xf32> to vector<2x32xf32>
    %22 = vector.extract_strided_slice %19 {offsets = [0, 96], sizes = [2, 32], strides = [1, 1]} : vector<2x128xf32> to vector<2x32xf32>
    %23 = vector.extract_strided_slice %14 {offsets = [0, 64], sizes = [2, 32], strides = [1, 1]} : vector<2x128xf32> to vector<2x32xf32>
    %24 = math.tanh %23 : vector<2x32xf32>
    %25 = arith.mulf %21, %9 : vector<2x32xf32>
    %26 = arith.mulf %20, %24 : vector<2x32xf32>
    %27 = arith.addf %25, %26 : vector<2x32xf32>
    %28 = math.tanh %27 : vector<2x32xf32>
    %29 = arith.mulf %22, %28 : vector<2x32xf32>
    %cst_15 = arith.constant dense<0.000000e+00> : vector<2x128xf32>
    %30 = tpu.matmul %29, %7, %cst_15 {dimension_numbers = #tpu.dot_dimension_numbers<[1], [0], [0], [1], [0, 0, 1, 1], [], []>} : vector<2x32xf32>, vector<32x128xf32>, vector<2x128xf32> -> vector<2x128xf32>
    %31 = vector.extract_strided_slice %30 {offsets = [0, 0], sizes = [1, 8], strides = [1, 1]} : vector<2x128xf32> to vector<1x8xf32>
    %32 = arith.addf %10, %31 : vector<1x8xf32>
    %33 = vector.extract_strided_slice %30 {offsets = [1, 8], sizes = [1, 8], strides = [1, 1]} : vector<2x128xf32> to vector<1x8xf32>
    %34 = arith.addf %32, %33 : vector<1x8xf32>
    %35 = vector.extract_strided_slice %5 {offsets = [2, 0], sizes = [2, 128], strides = [1, 1]} : vector<16x128xf32> to vector<2x128xf32>
    %cst_16 = arith.constant dense<0.000000e+00> : vector<2x128xf32>
    %36 = tpu.matmul %29, %6, %cst_16 {dimension_numbers = #tpu.dot_dimension_numbers<[1], [0], [0], [1], [0, 0, 1, 1], [], []>} : vector<2x32xf32>, vector<32x128xf32>, vector<2x128xf32> -> vector<2x128xf32>
    %37 = arith.addf %35, %36 : vector<2x128xf32>
    %38 = arith.negf %37 : vector<2x128xf32>
    %39 = math.exp %38 : vector<2x128xf32>
    %cst_17 = arith.constant 1.000000e+00 : f32
    %40 = vector.broadcast %cst_17 : f32 to vector<2x128xf32>
    %41 = arith.addf %40, %39 : vector<2x128xf32>
    %42 = arith.divf %40, %41 : vector<2x128xf32>
    %43 = vector.extract_strided_slice %42 {offsets = [0, 0], sizes = [2, 32], strides = [1, 1]} : vector<2x128xf32> to vector<2x32xf32>
    %44 = vector.extract_strided_slice %42 {offsets = [0, 32], sizes = [2, 32], strides = [1, 1]} : vector<2x128xf32> to vector<2x32xf32>
    %45 = vector.extract_strided_slice %42 {offsets = [0, 96], sizes = [2, 32], strides = [1, 1]} : vector<2x128xf32> to vector<2x32xf32>
    %46 = vector.extract_strided_slice %37 {offsets = [0, 64], sizes = [2, 32], strides = [1, 1]} : vector<2x128xf32> to vector<2x32xf32>
    %47 = math.tanh %46 : vector<2x32xf32>
    %48 = arith.mulf %44, %27 : vector<2x32xf32>
    %49 = arith.mulf %43, %47 : vector<2x32xf32>
    %50 = arith.addf %48, %49 : vector<2x32xf32>
    %51 = math.tanh %50 : vector<2x32xf32>
    %52 = arith.mulf %45, %51 : vector<2x32xf32>
    %cst_18 = arith.constant dense<0.000000e+00> : vector<2x128xf32>
    %53 = tpu.matmul %52, %7, %cst_18 {dimension_numbers = #tpu.dot_dimension_numbers<[1], [0], [0], [1], [0, 0, 1, 1], [], []>} : vector<2x32xf32>, vector<32x128xf32>, vector<2x128xf32> -> vector<2x128xf32>
    %54 = vector.extract_strided_slice %53 {offsets = [0, 16], sizes = [1, 8], strides = [1, 1]} : vector<2x128xf32> to vector<1x8xf32>
    %55 = arith.addf %34, %54 : vector<1x8xf32>
    %56 = vector.extract_strided_slice %53 {offsets = [1, 24], sizes = [1, 8], strides = [1, 1]} : vector<2x128xf32> to vector<1x8xf32>
    %57 = arith.addf %55, %56 : vector<1x8xf32>
    %58 = vector.extract_strided_slice %5 {offsets = [4, 0], sizes = [2, 128], strides = [1, 1]} : vector<16x128xf32> to vector<2x128xf32>
    %cst_19 = arith.constant dense<0.000000e+00> : vector<2x128xf32>
    %59 = tpu.matmul %52, %6, %cst_19 {dimension_numbers = #tpu.dot_dimension_numbers<[1], [0], [0], [1], [0, 0, 1, 1], [], []>} : vector<2x32xf32>, vector<32x128xf32>, vector<2x128xf32> -> vector<2x128xf32>
    %60 = arith.addf %58, %59 : vector<2x128xf32>
    %61 = arith.negf %60 : vector<2x128xf32>
    %62 = math.exp %61 : vector<2x128xf32>
    %cst_20 = arith.constant 1.000000e+00 : f32
    %63 = vector.broadcast %cst_20 : f32 to vector<2x128xf32>
    %64 = arith.addf %63, %62 : vector<2x128xf32>
    %65 = arith.divf %63, %64 : vector<2x128xf32>
    %66 = vector.extract_strided_slice %65 {offsets = [0, 0], sizes = [2, 32], strides = [1, 1]} : vector<2x128xf32> to vector<2x32xf32>
    %67 = vector.extract_strided_slice %65 {offsets = [0, 32], sizes = [2, 32], strides = [1, 1]} : vector<2x128xf32> to vector<2x32xf32>
    %68 = vector.extract_strided_slice %65 {offsets = [0, 96], sizes = [2, 32], strides = [1, 1]} : vector<2x128xf32> to vector<2x32xf32>
    %69 = vector.extract_strided_slice %60 {offsets = [0, 64], sizes = [2, 32], strides = [1, 1]} : vector<2x128xf32> to vector<2x32xf32>
    %70 = math.tanh %69 : vector<2x32xf32>
    %71 = arith.mulf %67, %50 : vector<2x32xf32>
    %72 = arith.mulf %66, %70 : vector<2x32xf32>
    %73 = arith.addf %71, %72 : vector<2x32xf32>
    %74 = math.tanh %73 : vector<2x32xf32>
    %75 = arith.mulf %68, %74 : vector<2x32xf32>
    %cst_21 = arith.constant dense<0.000000e+00> : vector<2x128xf32>
    %76 = tpu.matmul %75, %7, %cst_21 {dimension_numbers = #tpu.dot_dimension_numbers<[1], [0], [0], [1], [0, 0, 1, 1], [], []>} : vector<2x32xf32>, vector<32x128xf32>, vector<2x128xf32> -> vector<2x128xf32>
    %77 = vector.extract_strided_slice %76 {offsets = [0, 32], sizes = [1, 8], strides = [1, 1]} : vector<2x128xf32> to vector<1x8xf32>
    %78 = arith.addf %57, %77 : vector<1x8xf32>
    %79 = vector.extract_strided_slice %76 {offsets = [1, 40], sizes = [1, 8], strides = [1, 1]} : vector<2x128xf32> to vector<1x8xf32>
    %80 = arith.addf %78, %79 : vector<1x8xf32>
    %81 = vector.extract_strided_slice %5 {offsets = [6, 0], sizes = [2, 128], strides = [1, 1]} : vector<16x128xf32> to vector<2x128xf32>
    %cst_22 = arith.constant dense<0.000000e+00> : vector<2x128xf32>
    %82 = tpu.matmul %75, %6, %cst_22 {dimension_numbers = #tpu.dot_dimension_numbers<[1], [0], [0], [1], [0, 0, 1, 1], [], []>} : vector<2x32xf32>, vector<32x128xf32>, vector<2x128xf32> -> vector<2x128xf32>
    %83 = arith.addf %81, %82 : vector<2x128xf32>
    %84 = arith.negf %83 : vector<2x128xf32>
    %85 = math.exp %84 : vector<2x128xf32>
    %cst_23 = arith.constant 1.000000e+00 : f32
    %86 = vector.broadcast %cst_23 : f32 to vector<2x128xf32>
    %87 = arith.addf %86, %85 : vector<2x128xf32>
    %88 = arith.divf %86, %87 : vector<2x128xf32>
    %89 = vector.extract_strided_slice %88 {offsets = [0, 0], sizes = [2, 32], strides = [1, 1]} : vector<2x128xf32> to vector<2x32xf32>
    %90 = vector.extract_strided_slice %88 {offsets = [0, 32], sizes = [2, 32], strides = [1, 1]} : vector<2x128xf32> to vector<2x32xf32>
    %91 = vector.extract_strided_slice %88 {offsets = [0, 96], sizes = [2, 32], strides = [1, 1]} : vector<2x128xf32> to vector<2x32xf32>
    %92 = vector.extract_strided_slice %83 {offsets = [0, 64], sizes = [2, 32], strides = [1, 1]} : vector<2x128xf32> to vector<2x32xf32>
    %93 = math.tanh %92 : vector<2x32xf32>
    %94 = arith.mulf %90, %73 : vector<2x32xf32>
    %95 = arith.mulf %89, %93 : vector<2x32xf32>
    %96 = arith.addf %94, %95 : vector<2x32xf32>
    %97 = math.tanh %96 : vector<2x32xf32>
    %98 = arith.mulf %91, %97 : vector<2x32xf32>
    %cst_24 = arith.constant dense<0.000000e+00> : vector<2x128xf32>
    %99 = tpu.matmul %98, %7, %cst_24 {dimension_numbers = #tpu.dot_dimension_numbers<[1], [0], [0], [1], [0, 0, 1, 1], [], []>} : vector<2x32xf32>, vector<32x128xf32>, vector<2x128xf32> -> vector<2x128xf32>
    %100 = vector.extract_strided_slice %99 {offsets = [0, 48], sizes = [1, 8], strides = [1, 1]} : vector<2x128xf32> to vector<1x8xf32>
    %101 = arith.addf %80, %100 : vector<1x8xf32>
    %102 = vector.extract_strided_slice %99 {offsets = [1, 56], sizes = [1, 8], strides = [1, 1]} : vector<2x128xf32> to vector<1x8xf32>
    %103 = arith.addf %101, %102 : vector<1x8xf32>
    %104 = vector.extract_strided_slice %5 {offsets = [8, 0], sizes = [2, 128], strides = [1, 1]} : vector<16x128xf32> to vector<2x128xf32>
    %cst_25 = arith.constant dense<0.000000e+00> : vector<2x128xf32>
    %105 = tpu.matmul %98, %6, %cst_25 {dimension_numbers = #tpu.dot_dimension_numbers<[1], [0], [0], [1], [0, 0, 1, 1], [], []>} : vector<2x32xf32>, vector<32x128xf32>, vector<2x128xf32> -> vector<2x128xf32>
    %106 = arith.addf %104, %105 : vector<2x128xf32>
    %107 = arith.negf %106 : vector<2x128xf32>
    %108 = math.exp %107 : vector<2x128xf32>
    %cst_26 = arith.constant 1.000000e+00 : f32
    %109 = vector.broadcast %cst_26 : f32 to vector<2x128xf32>
    %110 = arith.addf %109, %108 : vector<2x128xf32>
    %111 = arith.divf %109, %110 : vector<2x128xf32>
    %112 = vector.extract_strided_slice %111 {offsets = [0, 0], sizes = [2, 32], strides = [1, 1]} : vector<2x128xf32> to vector<2x32xf32>
    %113 = vector.extract_strided_slice %111 {offsets = [0, 32], sizes = [2, 32], strides = [1, 1]} : vector<2x128xf32> to vector<2x32xf32>
    %114 = vector.extract_strided_slice %111 {offsets = [0, 96], sizes = [2, 32], strides = [1, 1]} : vector<2x128xf32> to vector<2x32xf32>
    %115 = vector.extract_strided_slice %106 {offsets = [0, 64], sizes = [2, 32], strides = [1, 1]} : vector<2x128xf32> to vector<2x32xf32>
    %116 = math.tanh %115 : vector<2x32xf32>
    %117 = arith.mulf %113, %96 : vector<2x32xf32>
    %118 = arith.mulf %112, %116 : vector<2x32xf32>
    %119 = arith.addf %117, %118 : vector<2x32xf32>
    %120 = math.tanh %119 : vector<2x32xf32>
    %121 = arith.mulf %114, %120 : vector<2x32xf32>
    %cst_27 = arith.constant dense<0.000000e+00> : vector<2x128xf32>
    %122 = tpu.matmul %121, %7, %cst_27 {dimension_numbers = #tpu.dot_dimension_numbers<[1], [0], [0], [1], [0, 0, 1, 1], [], []>} : vector<2x32xf32>, vector<32x128xf32>, vector<2x128xf32> -> vector<2x128xf32>
    %123 = vector.extract_strided_slice %122 {offsets = [0, 64], sizes = [1, 8], strides = [1, 1]} : vector<2x128xf32> to vector<1x8xf32>
    %124 = arith.addf %11, %123 : vector<1x8xf32>
    %125 = vector.extract_strided_slice %122 {offsets = [1, 72], sizes = [1, 8], strides = [1, 1]} : vector<2x128xf32> to vector<1x8xf32>
    %126 = arith.addf %124, %125 : vector<1x8xf32>
    %127 = vector.extract_strided_slice %5 {offsets = [10, 0], sizes = [2, 128], strides = [1, 1]} : vector<16x128xf32> to vector<2x128xf32>
    %cst_28 = arith.constant dense<0.000000e+00> : vector<2x128xf32>
    %128 = tpu.matmul %121, %6, %cst_28 {dimension_numbers = #tpu.dot_dimension_numbers<[1], [0], [0], [1], [0, 0, 1, 1], [], []>} : vector<2x32xf32>, vector<32x128xf32>, vector<2x128xf32> -> vector<2x128xf32>
    %129 = arith.addf %127, %128 : vector<2x128xf32>
    %130 = arith.negf %129 : vector<2x128xf32>
    %131 = math.exp %130 : vector<2x128xf32>
    %cst_29 = arith.constant 1.000000e+00 : f32
    %132 = vector.broadcast %cst_29 : f32 to vector<2x128xf32>
    %133 = arith.addf %132, %131 : vector<2x128xf32>
    %134 = arith.divf %132, %133 : vector<2x128xf32>
    %135 = vector.extract_strided_slice %134 {offsets = [0, 0], sizes = [2, 32], strides = [1, 1]} : vector<2x128xf32> to vector<2x32xf32>
    %136 = vector.extract_strided_slice %134 {offsets = [0, 32], sizes = [2, 32], strides = [1, 1]} : vector<2x128xf32> to vector<2x32xf32>
    %137 = vector.extract_strided_slice %134 {offsets = [0, 96], sizes = [2, 32], strides = [1, 1]} : vector<2x128xf32> to vector<2x32xf32>
    %138 = vector.extract_strided_slice %129 {offsets = [0, 64], sizes = [2, 32], strides = [1, 1]} : vector<2x128xf32> to vector<2x32xf32>
    %139 = math.tanh %138 : vector<2x32xf32>
    %140 = arith.mulf %136, %119 : vector<2x32xf32>
    %141 = arith.mulf %135, %139 : vector<2x32xf32>
    %142 = arith.addf %140, %141 : vector<2x32xf32>
    %143 = math.tanh %142 : vector<2x32xf32>
    %144 = arith.mulf %137, %143 : vector<2x32xf32>
    %cst_30 = arith.constant dense<0.000000e+00> : vector<2x128xf32>
    %145 = tpu.matmul %144, %7, %cst_30 {dimension_numbers = #tpu.dot_dimension_numbers<[1], [0], [0], [1], [0, 0, 1, 1], [], []>} : vector<2x32xf32>, vector<32x128xf32>, vector<2x128xf32> -> vector<2x128xf32>
    %146 = vector.extract_strided_slice %145 {offsets = [0, 80], sizes = [1, 8], strides = [1, 1]} : vector<2x128xf32> to vector<1x8xf32>
    %147 = arith.addf %126, %146 : vector<1x8xf32>
    %148 = vector.extract_strided_slice %145 {offsets = [1, 88], sizes = [1, 8], strides = [1, 1]} : vector<2x128xf32> to vector<1x8xf32>
    %149 = arith.addf %147, %148 : vector<1x8xf32>
    %150 = vector.extract_strided_slice %5 {offsets = [12, 0], sizes = [2, 128], strides = [1, 1]} : vector<16x128xf32> to vector<2x128xf32>
    %cst_31 = arith.constant dense<0.000000e+00> : vector<2x128xf32>
    %151 = tpu.matmul %144, %6, %cst_31 {dimension_numbers = #tpu.dot_dimension_numbers<[1], [0], [0], [1], [0, 0, 1, 1], [], []>} : vector<2x32xf32>, vector<32x128xf32>, vector<2x128xf32> -> vector<2x128xf32>
    %152 = arith.addf %150, %151 : vector<2x128xf32>
    %153 = arith.negf %152 : vector<2x128xf32>
    %154 = math.exp %153 : vector<2x128xf32>
    %cst_32 = arith.constant 1.000000e+00 : f32
    %155 = vector.broadcast %cst_32 : f32 to vector<2x128xf32>
    %156 = arith.addf %155, %154 : vector<2x128xf32>
    %157 = arith.divf %155, %156 : vector<2x128xf32>
    %158 = vector.extract_strided_slice %157 {offsets = [0, 0], sizes = [2, 32], strides = [1, 1]} : vector<2x128xf32> to vector<2x32xf32>
    %159 = vector.extract_strided_slice %157 {offsets = [0, 32], sizes = [2, 32], strides = [1, 1]} : vector<2x128xf32> to vector<2x32xf32>
    %160 = vector.extract_strided_slice %157 {offsets = [0, 96], sizes = [2, 32], strides = [1, 1]} : vector<2x128xf32> to vector<2x32xf32>
    %161 = vector.extract_strided_slice %152 {offsets = [0, 64], sizes = [2, 32], strides = [1, 1]} : vector<2x128xf32> to vector<2x32xf32>
    %162 = math.tanh %161 : vector<2x32xf32>
    %163 = arith.mulf %159, %142 : vector<2x32xf32>
    %164 = arith.mulf %158, %162 : vector<2x32xf32>
    %165 = arith.addf %163, %164 : vector<2x32xf32>
    %166 = math.tanh %165 : vector<2x32xf32>
    %167 = arith.mulf %160, %166 : vector<2x32xf32>
    %cst_33 = arith.constant dense<0.000000e+00> : vector<2x128xf32>
    %168 = tpu.matmul %167, %7, %cst_33 {dimension_numbers = #tpu.dot_dimension_numbers<[1], [0], [0], [1], [0, 0, 1, 1], [], []>} : vector<2x32xf32>, vector<32x128xf32>, vector<2x128xf32> -> vector<2x128xf32>
    %169 = vector.extract_strided_slice %168 {offsets = [0, 96], sizes = [1, 8], strides = [1, 1]} : vector<2x128xf32> to vector<1x8xf32>
    %170 = arith.addf %149, %169 : vector<1x8xf32>
    %171 = vector.extract_strided_slice %168 {offsets = [1, 104], sizes = [1, 8], strides = [1, 1]} : vector<2x128xf32> to vector<1x8xf32>
    %172 = arith.addf %170, %171 : vector<1x8xf32>
    %173 = vector.extract_strided_slice %5 {offsets = [14, 0], sizes = [2, 128], strides = [1, 1]} : vector<16x128xf32> to vector<2x128xf32>
    %cst_34 = arith.constant dense<0.000000e+00> : vector<2x128xf32>
    %174 = tpu.matmul %167, %6, %cst_34 {dimension_numbers = #tpu.dot_dimension_numbers<[1], [0], [0], [1], [0, 0, 1, 1], [], []>} : vector<2x32xf32>, vector<32x128xf32>, vector<2x128xf32> -> vector<2x128xf32>
    %175 = arith.addf %173, %174 : vector<2x128xf32>
    %176 = arith.negf %175 : vector<2x128xf32>
    %177 = math.exp %176 : vector<2x128xf32>
    %cst_35 = arith.constant 1.000000e+00 : f32
    %178 = vector.broadcast %cst_35 : f32 to vector<2x128xf32>
    %179 = arith.addf %178, %177 : vector<2x128xf32>
    %180 = arith.divf %178, %179 : vector<2x128xf32>
    %181 = vector.extract_strided_slice %180 {offsets = [0, 0], sizes = [2, 32], strides = [1, 1]} : vector<2x128xf32> to vector<2x32xf32>
    %182 = vector.extract_strided_slice %180 {offsets = [0, 32], sizes = [2, 32], strides = [1, 1]} : vector<2x128xf32> to vector<2x32xf32>
    %183 = vector.extract_strided_slice %180 {offsets = [0, 96], sizes = [2, 32], strides = [1, 1]} : vector<2x128xf32> to vector<2x32xf32>
    %184 = vector.extract_strided_slice %175 {offsets = [0, 64], sizes = [2, 32], strides = [1, 1]} : vector<2x128xf32> to vector<2x32xf32>
    %185 = math.tanh %184 : vector<2x32xf32>
    %186 = arith.mulf %182, %165 : vector<2x32xf32>
    %187 = arith.mulf %181, %185 : vector<2x32xf32>
    %188 = arith.addf %186, %187 : vector<2x32xf32>
    %189 = math.tanh %188 : vector<2x32xf32>
    %190 = arith.mulf %183, %189 : vector<2x32xf32>
    %cst_36 = arith.constant dense<0.000000e+00> : vector<2x128xf32>
    %191 = tpu.matmul %190, %7, %cst_36 {dimension_numbers = #tpu.dot_dimension_numbers<[1], [0], [0], [1], [0, 0, 1, 1], [], []>} : vector<2x32xf32>, vector<32x128xf32>, vector<2x128xf32> -> vector<2x128xf32>
    %192 = vector.extract_strided_slice %191 {offsets = [0, 112], sizes = [1, 8], strides = [1, 1]} : vector<2x128xf32> to vector<1x8xf32>
    %193 = arith.addf %172, %192 : vector<1x8xf32>
    %194 = vector.extract_strided_slice %191 {offsets = [1, 120], sizes = [1, 8], strides = [1, 1]} : vector<2x128xf32> to vector<1x8xf32>
    %195 = arith.addf %193, %194 : vector<1x8xf32>
    %196 = tpu.concatenate %103, %195 in 0 : vector<1x8xf32>, vector<1x8xf32> -> vector<2x8xf32>
    %c0_37 = arith.constant 0 : index
    %c0_38 = arith.constant 0 : index
    %197 = vector.load %arg5[%c0_37, %c0_38] : memref<1x8xf32, #tpu.memory_space<vmem>>, vector<1x8xf32>
    %198 = vector.broadcast %197 : vector<1x8xf32> to vector<2x8xf32>
    %199 = arith.addf %196, %198 : vector<2x8xf32>
    %c0_39 = arith.constant 0 : index
    %c0_40 = arith.constant 0 : index
    %200 = vector.load %arg6[%c0_39, %c0_40] : memref<2x8xf32, #tpu.memory_space<vmem>>, vector<2x8xf32>
    tpu.vector_store %arg6[%c0_39, %c0_40], %199 {strides = array<i32>} : memref<2x8xf32, #tpu.memory_space<vmem>>, vector<2x8xf32>,
    return
  }
}

</mosaic_0001>

<llo_original>
// kernel: lie_lstm_forward.1
$region0: #{lie_lstm_forward.1}
  #allocation0 [shape = 'u32[]', space=smem, size = 0x4, offset = 0x4, fixed_abs, tag = 'smem constant byte address 0x4 - core index']
  #allocation1 [shape = 'u32[72,128]{1,0:T(1,128)}', space=vmem, size = 0x9000, scoped, tag = 'internal scratch']
  %s0 = inlined_call_operand.vmem [shape: f32[16,4], index: 0, kind: input, shape index: {}]
  %s1 = inlined_call_operand.vmem [shape: f32[4,128], index: 1, kind: input, shape index: {}]
  %s2 = inlined_call_operand.hbm [shape: f32[32,128], index: 2, kind: input, shape index: {}]
  %s3 = inlined_call_operand.vmem [shape: f32[1,128], index: 3, kind: input, shape index: {}]
  %s4 = inlined_call_operand.hbm [shape: f32[32,128], index: 4, kind: input, shape index: {}]
  %s5 = inlined_call_operand.vmem [shape: f32[1,8], index: 5, kind: input, shape index: {}]
  %s6 = inlined_call_operand.hbm [shape: f32[2,8], index: 6, kind: output, shape index: {}]
  %s7 = sld [smem:[#allocation0]]
  $region42: #{lie_lstm_forward.1} parent=0
    _
  %s9 = ssub.s32 1, %s7
  %s10 = scalar_select 0, %s9, %s7
  $region1: #{lie_lstm_forward.1} parent=0
    #allocation2 [shape = 'u8[16384]{0}', space=vmem, size = 0x4000, scoped, tag = 'input window, operand 2, single buffered']
    #allocation3 [shape = 's32[1]{0}', space=sflag, size = 0x4, scoped, tag = 'scoped memory for lie_lstm_forward.1']
    #allocation4 [shape = 's32[1]{0}', space=sflag, size = 0x4, scoped, tag = 'scoped memory for lie_lstm_forward.1']
    #allocation5 [shape = 'u8[16384]{0}', space=vmem, size = 0x4000, scoped, tag = 'input window, operand 4, single buffered']
    #allocation6 [shape = 's32[1]{0}', space=sflag, size = 0x4, scoped, tag = 'scoped memory for lie_lstm_forward.1']
    #allocation7 [shape = 'u8[1024]{0}', space=vmem, size = 0x400, scoped, tag = 'output window, operand 0, single buffered']
    %11 = vsyncpa [#allocation3], 0
    %12 = vsyncpa [#allocation6], 0
    %13 = vsyncpa [#allocation4], 0
    // Predicated region
    $region2: #{lie_lstm_forward.1} parent=1 // pred_check
      _
    $region3: #{lie_lstm_forward.1} parent=1 // pred_check_branch
      %15 = sbr.rel (0) target = $region5
    $region4: #{lie_lstm_forward.1} parent=1 // pred_region
      _
    $region5: #{lie_lstm_forward.1} parent=1 // pred_fallthru
      _
    // Predicated region
    $region6: #{lie_lstm_forward.1} parent=1 // pred_check
      _
    $region7: #{lie_lstm_forward.1} parent=1 // pred_check_branch
      %17 = sbr.rel (0) target = $region9
    $region8: #{lie_lstm_forward.1} parent=1 // pred_region
      _
    $region9: #{lie_lstm_forward.1} parent=1 // pred_fallthru
      _
    // Predicated region
    $region10: #{lie_lstm_forward.1} parent=1 // pred_check
      _
    $region11: #{lie_lstm_forward.1} parent=1 // pred_check_branch
      %19 = sbr.rel (0) target = $region13
    $region12: #{lie_lstm_forward.1} parent=1 // pred_region
      %21 = vsyncadd [#allocation3], 0
      %s22 = sshll.u32 %s2, 4
      %s23 = int_to_ptr.hbm [resolvable:$true] %s22
      %s24 = sshll.u32 [#allocation2], 4
      %s25 = int_to_ptr.vmem [resolvable:$true] %s24
      %30 = dma.hbm_to_vmem [thread:$0]  %s23, 512, %s25, [#allocation3], 128, 128, 8
    $region13: #{lie_lstm_forward.1} parent=1 // pred_fallthru
      _
    // Predicated region
    $region14: #{lie_lstm_forward.1} parent=1 // pred_check
      _
    $region15: #{lie_lstm_forward.1} parent=1 // pred_check_branch
      %32 = sbr.rel (0) target = $region17
    $region16: #{lie_lstm_forward.1} parent=1 // pred_region
      _
    $region17: #{lie_lstm_forward.1} parent=1 // pred_fallthru
      _
    // Predicated region
    $region18: #{lie_lstm_forward.1} parent=1 // pred_check
      _
    $region19: #{lie_lstm_forward.1} parent=1 // pred_check_branch
      %34 = sbr.rel (0) target = $region21
    $region20: #{lie_lstm_forward.1} parent=1 // pred_region
      %36 = vsyncadd [#allocation6], 0
      %s37 = sshll.u32 %s4, 4
      %s38 = int_to_ptr.hbm [resolvable:$true] %s37
      %s39 = sshll.u32 [#allocation5], 4
      %s40 = int_to_ptr.vmem [resolvable:$true] %s39
      %45 = dma.hbm_to_vmem [thread:$0]  %s38, 512, %s40, [#allocation6], 128, 128, 8
    $region21: #{lie_lstm_forward.1} parent=1 // pred_fallthru
      _
    // Predicated region
    $region22: #{lie_lstm_forward.1} parent=1 // pred_check
      _
    $region23: #{lie_lstm_forward.1} parent=1 // pred_check_branch
      %47 = sbr.rel (0) target = $region25
    $region24: #{lie_lstm_forward.1} parent=1 // pred_region
      _
    $region25: #{lie_lstm_forward.1} parent=1 // pred_fallthru
      _
    // Predicated region
    $region26: #{lie_lstm_forward.1} parent=1 // pred_check
      _
    $region27: #{lie_lstm_forward.1} parent=1 // pred_check_branch
      %49 = sbr.rel (0) target = $region29
    $region28: #{lie_lstm_forward.1} parent=1 // pred_region
      %51 = dma.done [#allocation3], 512
    $region29: #{lie_lstm_forward.1} parent=1 // pred_fallthru
      _
    // Predicated region
    $region30: #{lie_lstm_forward.1} parent=1 // pred_check
      _
    $region31: #{lie_lstm_forward.1} parent=1 // pred_check_branch
      %53 = sbr.rel (0) target = $region33
    $region32: #{lie_lstm_forward.1} parent=1 // pred_region
      %55 = dma.done [#allocation6], 512
    $region33: #{lie_lstm_forward.1} parent=1 // pred_fallthru
      _
    %v56 = vld [vmem:[%s0] sm:$0xff]
    %v57 = vld [vmem:[%s0 + $0x8] sm:$0xff]
    %v58 = vld [vmem:[%s1] sm:$0xf]
    %v59 = vld [vmem:[%s3] sm:$0x1]
    %v61 = vperm.slane %v59, 0
    %vm63 = vcmask 31744
    %v65 = vsel %vm63, %v56, 0
    %v68 = vsel %vm63, %v57, 0
    %vm70 = vcmask 1043456
    %v72 = vsel %vm70, %v58, 0
    %74 = vmatpush.msra.mxu0 0.0
    %75 = vmatpush.msra.mxu0 0.0
    %76 = vmatpush.msra.mxu0 0.0
    %77 = vmatpush.msra.mxu0 0.0
    %78 = vmatpush.msra.mxu0 0.0
    %79 = vmatpush.msra.mxu0 0.0
    %80 = vmatpush.msra.mxu0 0.0
    %81 = vmatpush.msra.mxu0 0.0
    %82 = vmatpush.msra.mxu0 0.0
    %83 = vmatpush.msra.mxu0 0.0
    %84 = vmatpush.msra.mxu0 0.0
    %85 = vmatpush.msra.mxu0 0.0
    %86 = vmatpush.msra.mxu0 0.0
    %87 = vmatpush.msra.mxu0 0.0
    %88 = vmatpush.msra.mxu0 0.0
    %89 = vmatpush.msra.mxu0 %v72
    %90 = vmatmul.f32.gmra.mxu0 %v65
    %v91 = vpop.f32.mrf.mxu0
    %v92 = vadd.f32 %v61, %v91
    %93 = vmatmul.f32.gmra.mxu0 %v68
    %v94 = vpop.f32.mrf.mxu0
    %v95 = vadd.f32 %v61, %v94
    %96 = vdwg.mxu0
    %v97 = vld [vmem:[#allocation2] sm:$0xff]
    %v98 = vld [vmem:[#allocation2 + $0x8] sm:$0xff]
    %v99 = vld [vmem:[#allocation2 + $0x10] sm:$0xff]
    %v100 = vld [vmem:[#allocation2 + $0x18] sm:$0xff]
    %v101 = vld [vmem:[#allocation5] sm:$0xff]
    %v102 = vld [vmem:[#allocation5 + $0x8] sm:$0xff]
    %v103 = vld [vmem:[#allocation5 + $0x10] sm:$0xff]
    %v104 = vld [vmem:[#allocation5 + $0x18] sm:$0xff]
    %vm105 = vcmask 261120
    %v107 = vsel %vm105, 0.0, 0
    %109 = vmatpush.msra.mxu0 0.0
    %110 = vmatpush.msra.mxu0 0.0
    %111 = vmatpush.msra.mxu0 0.0
    %112 = vmatpush.msra.mxu0 0.0
    %113 = vmatpush.msra.mxu0 0.0
    %114 = vmatpush.msra.mxu0 0.0
    %115 = vmatpush.msra.mxu0 0.0
    %116 = vmatpush.msra.mxu0 0.0
    %117 = vmatpush.msra.mxu0 0.0
    %118 = vmatpush.msra.mxu0 0.0
    %119 = vmatpush.msra.mxu0 0.0
    %120 = vmatpush.msra.mxu0 0.0
    %121 = vmatpush.msra.mxu0 %v100
    %122 = vmatpush.msra.mxu0 %v99
    %123 = vmatpush.msra.mxu0 %v98
    %124 = vmatpush.msra.mxu0 %v97
    %125 = vmatmul.f32.gmra.mxu0 %v107
    %v126 = vpop.f32.mrf.mxu0
    %v127 = vadd.f32 0.0, %v126
    %128 = vdwg.mxu0
    %v129 = vadd.f32 %v92, %v127
    %v130 = vxor.u32 %v129, 2147483648
    %v131 = vmul.f32 %v130, 1.442695
    %v132 = vpow.pop %v131
    %v133 = vadd.f32 %v132, 1.0
    %v134 = vrcp.pop %v133
    %v135 = vmul.f32 %v133, %v134
    %v136 = vsub.f32 1.0, %v135
    %v137 = vmul.f32 %v134, %v136
    %v138 = vadd.f32 %v134, %v137
    %vm139 = vweird.f32 %v133
    %vm140 = vweird.f32 %v134
    %vm141 = vmor %vm139, %vm140
    %v142 = vsel %vm141, %v134, %v138
    %v143 = vand.u32 2147483647, %v133
    %vm144 = vcmp.eq.f32.partialorder %v143, 8.507059e+37
    %v145 = vand.u32 %v133, 2147483648
    %v146 = vor.u32 1.1754944e-38, %v145
    %v147 = vsel %vm144, %v146, %v142
    %v148 = vmul.f32 1.0, %v147
    %v149 = vtanh.pop %v129
    %v150 = vmul.f32 %v148, 0.0
    %152 = vrot.lane.b32.xlu0 %v149, 64
    %v153 = vpop.permute.xlu0 %152
    %v155 = vmul.f32 %v148, %v153
    %157 = vrot.lane.b32.xlu0 %v155, 32
    %v158 = vpop.permute.xlu0 %157
    %v160 = vadd.f32 %v150, %v158
    %v161 = vtanh.pop %v160
    %163 = vrot.lane.b32.xlu0 %v161, 64
    %v164 = vpop.permute.xlu0 %163
    %v166 = vmul.f32 %v148, %v164
    %168 = vrot.lane.b32.xlu0 %v166, 32
    %v169 = vpop.permute.xlu0 %168
    %v170 = vsel %vm105, %v169, 0
    %172 = vmatpush.msra.mxu0 0.0
    %173 = vmatpush.msra.mxu0 0.0
    %174 = vmatpush.msra.mxu0 0.0
    %175 = vmatpush.msra.mxu0 0.0
    %176 = vmatpush.msra.mxu0 0.0
    %177 = vmatpush.msra.mxu0 0.0
    %178 = vmatpush.msra.mxu0 0.0
    %179 = vmatpush.msra.mxu0 0.0
    %180 = vmatpush.msra.mxu0 0.0
    %181 = vmatpush.msra.mxu0 0.0
    %182 = vmatpush.msra.mxu0 0.0
    %183 = vmatpush.msra.mxu0 0.0
    %184 = vmatpush.msra.mxu0 %v104
    %185 = vmatpush.msra.mxu0 %v103
    %186 = vmatpush.msra.mxu0 %v102
    %187 = vmatpush.msra.mxu0 %v101
    %188 = vmatmul.f32.gmra.mxu0 %v170
    %v189 = vpop.f32.mrf.mxu0
    %v190 = vadd.f32 0.0, %v189
    %191 = vdwg.mxu0
    %v192 = vadd.f32 %v190, 0.0
    %v194 = vrot.slane %v190, 1
    %195 = vrot.lane.b32.xlu0 %v194, 120
    %v196 = vpop.permute.xlu0 %195
    %v198 = vadd.f32 %v192, %v196
    %199 = vmatpush.msra.mxu0 0.0
    %200 = vmatpush.msra.mxu0 0.0
    %201 = vmatpush.msra.mxu0 0.0
    %202 = vmatpush.msra.mxu0 0.0
    %203 = vmatpush.msra.mxu0 0.0
    %204 = vmatpush.msra.mxu0 0.0
    %205 = vmatpush.msra.mxu0 0.0
    %206 = vmatpush.msra.mxu0 0.0
    %207 = vmatpush.msra.mxu0 0.0
    %208 = vmatpush.msra.mxu0 0.0
    %209 = vmatpush.msra.mxu0 0.0
    %210 = vmatpush.msra.mxu0 0.0
    %211 = vmatpush.msra.mxu0 %v100
    %212 = vmatpush.msra.mxu0 %v99
    %213 = vmatpush.msra.mxu0 %v98
    %214 = vmatpush.msra.mxu0 %v97
    %215 = vmatmul.f32.gmra.mxu0 %v170
    %v216 = vpop.f32.mrf.mxu0
    %v217 = vadd.f32 0.0, %v216
    %218 = vdwg.mxu0
    %v220 = vrot.slane %v217, 6
    %v222 = vadd.f32 %v92, %v220
    %v223 = vxor.u32 %v222, 2147483648
    %v224 = vmul.f32 %v223, 1.442695
    %v225 = vpow.pop %v224
    %v226 = vadd.f32 %v225, 1.0
    %v227 = vrcp.pop %v226
    %v228 = vmul.f32 %v226, %v227
    %v229 = vsub.f32 1.0, %v228
    %v230 = vmul.f32 %v227, %v229
    %v231 = vadd.f32 %v227, %v230
    %vm232 = vweird.f32 %v226
    %vm233 = vweird.f32 %v227
    %vm234 = vmor %vm232, %vm233
    %v235 = vsel %vm234, %v227, %v231
    %v236 = vand.u32 2147483647, %v226
    %vm237 = vcmp.eq.f32.partialorder %v236, 8.507059e+37
    %v238 = vand.u32 %v226, 2147483648
    %v239 = vor.u32 1.1754944e-38, %v238
    %v240 = vsel %vm237, %v239, %v235
    %v241 = vmul.f32 1.0, %v240
    %v242 = vtanh.pop %v222
    %v244 = vrot.slane %v160, 6
    %v246 = vmul.f32 %v241, %v244
    %248 = vrot.lane.b32.xlu0 %v242, 64
    %v249 = vpop.permute.xlu0 %248
    %v251 = vmul.f32 %v241, %v249
    %253 = vrot.lane.b32.xlu0 %v251, 32
    %v254 = vpop.permute.xlu0 %253
    %v256 = vadd.f32 %v246, %v254
    %v257 = vtanh.pop %v256
    %259 = vrot.lane.b32.xlu0 %v257, 64
    %v260 = vpop.permute.xlu0 %259
    %v262 = vmul.f32 %v241, %v260
    %v264 = vrot.slane %v262, 2
    %265 = vrot.lane.b32.xlu0 %v264, 32
    %v266 = vpop.permute.xlu0 %265
    %v267 = vsel %vm105, %v266, 0
    %269 = vmatpush.msra.mxu0 0.0
    %270 = vmatpush.msra.mxu0 0.0
    %271 = vmatpush.msra.mxu0 0.0
    %272 = vmatpush.msra.mxu0 0.0
    %273 = vmatpush.msra.mxu0 0.0
    %274 = vmatpush.msra.mxu0 0.0
    %275 = vmatpush.msra.mxu0 0.0
    %276 = vmatpush.msra.mxu0 0.0
    %277 = vmatpush.msra.mxu0 0.0
    %278 = vmatpush.msra.mxu0 0.0
    %279 = vmatpush.msra.mxu0 0.0
    %280 = vmatpush.msra.mxu0 0.0
    %281 = vmatpush.msra.mxu0 %v104
    %282 = vmatpush.msra.mxu0 %v103
    %283 = vmatpush.msra.mxu0 %v102
    %284 = vmatpush.msra.mxu0 %v101
    %285 = vmatmul.f32.gmra.mxu0 %v267
    %v286 = vpop.f32.mrf.mxu0
    %v287 = vadd.f32 0.0, %v286
    %288 = vdwg.mxu0
    %290 = vrot.lane.b32.xlu0 %v287, 112
    %v291 = vpop.permute.xlu0 %290
    %v293 = vadd.f32 %v198, %v291
    %v294 = vrot.slane %v287, 1
    %295 = vrot.lane.b32.xlu0 %v294, 104
    %v296 = vpop.permute.xlu0 %295
    %v298 = vadd.f32 %v293, %v296
    %299 = vmatpush.msra.mxu0 0.0
    %300 = vmatpush.msra.mxu0 0.0
    %301 = vmatpush.msra.mxu0 0.0
    %302 = vmatpush.msra.mxu0 0.0
    %303 = vmatpush.msra.mxu0 0.0
    %304 = vmatpush.msra.mxu0 0.0
    %305 = vmatpush.msra.mxu0 0.0
    %306 = vmatpush.msra.mxu0 0.0
    %307 = vmatpush.msra.mxu0 0.0
    %308 = vmatpush.msra.mxu0 0.0
    %309 = vmatpush.msra.mxu0 0.0
    %310 = vmatpush.msra.mxu0 0.0
    %311 = vmatpush.msra.mxu0 %v100
    %312 = vmatpush.msra.mxu0 %v99
    %313 = vmatpush.msra.mxu0 %v98
    %314 = vmatpush.msra.mxu0 %v97
    %315 = vmatmul.f32.gmra.mxu0 %v267
    %v316 = vpop.f32.mrf.mxu0
    %v317 = vadd.f32 0.0, %v316
    %318 = vdwg.mxu0
    %v320 = vrot.slane %v317, 4
    %v322 = vadd.f32 %v92, %v320
    %v323 = vxor.u32 %v322, 2147483648
    %v324 = vmul.f32 %v323, 1.442695
    %v325 = vpow.pop %v324
    %v326 = vadd.f32 %v325, 1.0
    %v327 = vrcp.pop %v326
    %v328 = vmul.f32 %v326, %v327
    %v329 = vsub.f32 1.0, %v328
    %v330 = vmul.f32 %v327, %v329
    %v331 = vadd.f32 %v327, %v330
    %vm332 = vweird.f32 %v326
    %vm333 = vweird.f32 %v327
    %vm334 = vmor %vm332, %vm333
    %v335 = vsel %vm334, %v327, %v331
    %v336 = vand.u32 2147483647, %v326
    %vm337 = vcmp.eq.f32.partialorder %v336, 8.507059e+37
    %v338 = vand.u32 %v326, 2147483648
    %v339 = vor.u32 1.1754944e-38, %v338
    %v340 = vsel %vm337, %v339, %v335
    %v341 = vmul.f32 1.0, %v340
    %v342 = vtanh.pop %v322
    %v344 = vrot.slane %v256, 6
    %v346 = vmul.f32 %v341, %v344
    %348 = vrot.lane.b32.xlu0 %v342, 64
    %v349 = vpop.permute.xlu0 %348
    %v351 = vmul.f32 %v341, %v349
    %353 = vrot.lane.b32.xlu0 %v351, 32
    %v354 = vpop.permute.xlu0 %353
    %v356 = vadd.f32 %v346, %v354
    %v357 = vtanh.pop %v356
    %359 = vrot.lane.b32.xlu0 %v357, 64
    %v360 = vpop.permute.xlu0 %359
    %v362 = vmul.f32 %v341, %v360
    %v364 = vrot.slane %v362, 4
    %365 = vrot.lane.b32.xlu0 %v364, 32
    %v366 = vpop.permute.xlu0 %365
    %v367 = vsel %vm105, %v366, 0
    %369 = vmatpush.msra.mxu0 0.0
    %370 = vmatpush.msra.mxu0 0.0
    %371 = vmatpush.msra.mxu0 0.0
    %372 = vmatpush.msra.mxu0 0.0
    %373 = vmatpush.msra.mxu0 0.0
    %374 = vmatpush.msra.mxu0 0.0
    %375 = vmatpush.msra.mxu0 0.0
    %376 = vmatpush.msra.mxu0 0.0
    %377 = vmatpush.msra.mxu0 0.0
    %378 = vmatpush.msra.mxu0 0.0
    %379 = vmatpush.msra.mxu0 0.0
    %380 = vmatpush.msra.mxu0 0.0
    %381 = vmatpush.msra.mxu0 %v104
    %382 = vmatpush.msra.mxu0 %v103
    %383 = vmatpush.msra.mxu0 %v102
    %384 = vmatpush.msra.mxu0 %v101
    %385 = vmatmul.f32.gmra.mxu0 %v367
    %v386 = vpop.f32.mrf.mxu0
    %v387 = vadd.f32 0.0, %v386
    %388 = vdwg.mxu0
    %390 = vrot.lane.b32.xlu0 %v387, 96
    %v391 = vpop.permute.xlu0 %390
    %v393 = vadd.f32 %v298, %v391
    %v394 = vrot.slane %v387, 1
    %395 = vrot.lane.b32.xlu0 %v394, 88
    %v396 = vpop.permute.xlu0 %395
    %v398 = vadd.f32 %v393, %v396
    %399 = vmatpush.msra.mxu0 0.0
    %400 = vmatpush.msra.mxu0 0.0
    %401 = vmatpush.msra.mxu0 0.0
    %402 = vmatpush.msra.mxu0 0.0
    %403 = vmatpush.msra.mxu0 0.0
    %404 = vmatpush.msra.mxu0 0.0
    %405 = vmatpush.msra.mxu0 0.0
    %406 = vmatpush.msra.mxu0 0.0
    %407 = vmatpush.msra.mxu0 0.0
    %408 = vmatpush.msra.mxu0 0.0
    %409 = vmatpush.msra.mxu0 0.0
    %410 = vmatpush.msra.mxu0 0.0
    %411 = vmatpush.msra.mxu0 %v100
    %412 = vmatpush.msra.mxu0 %v99
    %413 = vmatpush.msra.mxu0 %v98
    %414 = vmatpush.msra.mxu0 %v97
    %415 = vmatmul.f32.gmra.mxu0 %v367
    %v416 = vpop.f32.mrf.mxu0
    %v417 = vadd.f32 0.0, %v416
    %418 = vdwg.mxu0
    %v420 = vrot.slane %v417, 2
    %v422 = vadd.f32 %v92, %v420
    %v423 = vxor.u32 %v422, 2147483648
    %v424 = vmul.f32 %v423, 1.442695
    %v425 = vpow.pop %v424
    %v426 = vadd.f32 %v425, 1.0
    %v427 = vrcp.pop %v426
    %v428 = vmul.f32 %v426, %v427
    %v429 = vsub.f32 1.0, %v428
    %v430 = vmul.f32 %v427, %v429
    %v431 = vadd.f32 %v427, %v430
    %vm432 = vweird.f32 %v426
    %vm433 = vweird.f32 %v427
    %vm434 = vmor %vm432, %vm433
    %v435 = vsel %vm434, %v427, %v431
    %v436 = vand.u32 2147483647, %v426
    %vm437 = vcmp.eq.f32.partialorder %v436, 8.507059e+37
    %v438 = vand.u32 %v426, 2147483648
    %v439 = vor.u32 1.1754944e-38, %v438
    %v440 = vsel %vm437, %v439, %v435
    %v441 = vmul.f32 1.0, %v440
    %v442 = vtanh.pop %v422
    %v444 = vrot.slane %v356, 6
    %v446 = vmul.f32 %v441, %v444
    %448 = vrot.lane.b32.xlu0 %v442, 64
    %v449 = vpop.permute.xlu0 %448
    %v451 = vmul.f32 %v441, %v449
    %453 = vrot.lane.b32.xlu0 %v451, 32
    %v454 = vpop.permute.xlu0 %453
    %v456 = vadd.f32 %v446, %v454
    %v457 = vtanh.pop %v456
    %459 = vrot.lane.b32.xlu0 %v457, 64
    %v460 = vpop.permute.xlu0 %459
    %v462 = vmul.f32 %v441, %v460
    %v464 = vrot.slane %v462, 6
    %465 = vrot.lane.b32.xlu0 %v464, 32
    %v466 = vpop.permute.xlu0 %465
    %v467 = vsel %vm105, %v466, 0
    %469 = vmatpush.msra.mxu0 0.0
    %470 = vmatpush.msra.mxu0 0.0
    %471 = vmatpush.msra.mxu0 0.0
    %472 = vmatpush.msra.mxu0 0.0
    %473 = vmatpush.msra.mxu0 0.0
    %474 = vmatpush.msra.mxu0 0.0
    %475 = vmatpush.msra.mxu0 0.0
    %476 = vmatpush.msra.mxu0 0.0
    %477 = vmatpush.msra.mxu0 0.0
    %478 = vmatpush.msra.mxu0 0.0
    %479 = vmatpush.msra.mxu0 0.0
    %480 = vmatpush.msra.mxu0 0.0
    %481 = vmatpush.msra.mxu0 %v104
    %482 = vmatpush.msra.mxu0 %v103
    %483 = vmatpush.msra.mxu0 %v102
    %484 = vmatpush.msra.mxu0 %v101
    %485 = vmatmul.f32.gmra.mxu0 %v467
    %v486 = vpop.f32.mrf.mxu0
    %v487 = vadd.f32 0.0, %v486
    %488 = vdwg.mxu0
    %490 = vrot.lane.b32.xlu0 %v487, 80
    %v491 = vpop.permute.xlu0 %490
    %v493 = vadd.f32 %v398, %v491
    %v494 = vrot.slane %v487, 1
    %495 = vrot.lane.b32.xlu0 %v494, 72
    %v496 = vpop.permute.xlu0 %495
    %v498 = vadd.f32 %v493, %v496
    %499 = vmatpush.msra.mxu0 0.0
    %500 = vmatpush.msra.mxu0 0.0
    %501 = vmatpush.msra.mxu0 0.0
    %502 = vmatpush.msra.mxu0 0.0
    %503 = vmatpush.msra.mxu0 0.0
    %504 = vmatpush.msra.mxu0 0.0
    %505 = vmatpush.msra.mxu0 0.0
    %506 = vmatpush.msra.mxu0 0.0
    %507 = vmatpush.msra.mxu0 0.0
    %508 = vmatpush.msra.mxu0 0.0
    %509 = vmatpush.msra.mxu0 0.0
    %510 = vmatpush.msra.mxu0 0.0
    %511 = vmatpush.msra.mxu0 %v100
    %512 = vmatpush.msra.mxu0 %v99
    %513 = vmatpush.msra.mxu0 %v98
    %514 = vmatpush.msra.mxu0 %v97
    %515 = vmatmul.f32.gmra.mxu0 %v467
    %v516 = vpop.f32.mrf.mxu0
    %v517 = vadd.f32 0.0, %v516
    %518 = vdwg.mxu0
    %v519 = vadd.f32 %v95, %v517
    %v520 = vxor.u32 %v519, 2147483648
    %v521 = vmul.f32 %v520, 1.442695
    %v522 = vpow.pop %v521
    %v523 = vadd.f32 %v522, 1.0
    %v524 = vrcp.pop %v523
    %v525 = vmul.f32 %v523, %v524
    %v526 = vsub.f32 1.0, %v525
    %v527 = vmul.f32 %v524, %v526
    %v528 = vadd.f32 %v524, %v527
    %vm529 = vweird.f32 %v523
    %vm530 = vweird.f32 %v524
    %vm531 = vmor %vm529, %vm530
    %v532 = vsel %vm531, %v524, %v528
    %v533 = vand.u32 2147483647, %v523
    %vm534 = vcmp.eq.f32.partialorder %v533, 8.507059e+37
    %v535 = vand.u32 %v523, 2147483648
    %v536 = vor.u32 1.1754944e-38, %v535
    %v537 = vsel %vm534, %v536, %v532
    %v538 = vmul.f32 1.0, %v537
    %v539 = vtanh.pop %v519
    %v541 = vrot.slane %v456, 6
    %v543 = vmul.f32 %v538, %v541
    %545 = vrot.lane.b32.xlu0 %v539, 64
    %v546 = vpop.permute.xlu0 %545
    %v548 = vmul.f32 %v538, %v546
    %550 = vrot.lane.b32.xlu0 %v548, 32
    %v551 = vpop.permute.xlu0 %550
    %v553 = vadd.f32 %v543, %v551
    %v554 = vtanh.pop %v553
    %556 = vrot.lane.b32.xlu0 %v554, 64
    %v557 = vpop.permute.xlu0 %556
    %v559 = vmul.f32 %v538, %v557
    %561 = vrot.lane.b32.xlu0 %v559, 32
    %v562 = vpop.permute.xlu0 %561
    %v563 = vsel %vm105, %v562, 0
    %565 = vmatpush.msra.mxu0 0.0
    %566 = vmatpush.msra.mxu0 0.0
    %567 = vmatpush.msra.mxu0 0.0
    %568 = vmatpush.msra.mxu0 0.0
    %569 = vmatpush.msra.mxu0 0.0
    %570 = vmatpush.msra.mxu0 0.0
    %571 = vmatpush.msra.mxu0 0.0
    %572 = vmatpush.msra.mxu0 0.0
    %573 = vmatpush.msra.mxu0 0.0
    %574 = vmatpush.msra.mxu0 0.0
    %575 = vmatpush.msra.mxu0 0.0
    %576 = vmatpush.msra.mxu0 0.0
    %577 = vmatpush.msra.mxu0 %v104
    %578 = vmatpush.msra.mxu0 %v103
    %579 = vmatpush.msra.mxu0 %v102
    %580 = vmatpush.msra.mxu0 %v101
    %581 = vmatmul.f32.gmra.mxu0 %v563
    %v582 = vpop.f32.mrf.mxu0
    %v583 = vadd.f32 0.0, %v582
    %584 = vdwg.mxu0
    %v585 = vadd.f32 %v583, 0.0
    %v587 = vrot.slane %v583, 1
    %588 = vrot.lane.b32.xlu0 %v587, 120
    %v589 = vpop.permute.xlu0 %588
    %v591 = vadd.f32 %v585, %v589
    %592 = vmatpush.msra.mxu0 0.0
    %593 = vmatpush.msra.mxu0 0.0
    %594 = vmatpush.msra.mxu0 0.0
    %595 = vmatpush.msra.mxu0 0.0
    %596 = vmatpush.msra.mxu0 0.0
    %597 = vmatpush.msra.mxu0 0.0
    %598 = vmatpush.msra.mxu0 0.0
    %599 = vmatpush.msra.mxu0 0.0
    %600 = vmatpush.msra.mxu0 0.0
    %601 = vmatpush.msra.mxu0 0.0
    %602 = vmatpush.msra.mxu0 0.0
    %603 = vmatpush.msra.mxu0 0.0
    %604 = vmatpush.msra.mxu0 %v100
    %605 = vmatpush.msra.mxu0 %v99
    %606 = vmatpush.msra.mxu0 %v98
    %607 = vmatpush.msra.mxu0 %v97
    %608 = vmatmul.f32.gmra.mxu0 %v563
    %v609 = vpop.f32.mrf.mxu0
    %v610 = vadd.f32 0.0, %v609
    %611 = vdwg.mxu0
    %v613 = vrot.slane %v610, 6
    %v615 = vadd.f32 %v95, %v613
    %v616 = vxor.u32 %v615, 2147483648
    %v617 = vmul.f32 %v616, 1.442695
    %v618 = vpow.pop %v617
    %v619 = vadd.f32 %v618, 1.0
    %v620 = vrcp.pop %v619
    %v621 = vmul.f32 %v619, %v620
    %v622 = vsub.f32 1.0, %v621
    %v623 = vmul.f32 %v620, %v622
    %v624 = vadd.f32 %v620, %v623
    %vm625 = vweird.f32 %v619
    %vm626 = vweird.f32 %v620
    %vm627 = vmor %vm625, %vm626
    %v628 = vsel %vm627, %v620, %v624
    %v629 = vand.u32 2147483647, %v619
    %vm630 = vcmp.eq.f32.partialorder %v629, 8.507059e+37
    %v631 = vand.u32 %v619, 2147483648
    %v632 = vor.u32 1.1754944e-38, %v631
    %v633 = vsel %vm630, %v632, %v628
    %v634 = vmul.f32 1.0, %v633
    %v635 = vtanh.pop %v615
    %v637 = vrot.slane %v553, 6
    %v639 = vmul.f32 %v634, %v637
    %641 = vrot.lane.b32.xlu0 %v635, 64
    %v642 = vpop.permute.xlu0 %641
    %v644 = vmul.f32 %v634, %v642
    %646 = vrot.lane.b32.xlu0 %v644, 32
    %v647 = vpop.permute.xlu0 %646
    %v649 = vadd.f32 %v639, %v647
    %v650 = vtanh.pop %v649
    %652 = vrot.lane.b32.xlu0 %v650, 64
    %v653 = vpop.permute.xlu0 %652
    %v655 = vmul.f32 %v634, %v653
    %v657 = vrot.slane %v655, 2
    %658 = vrot.lane.b32.xlu0 %v657, 32
    %v659 = vpop.permute.xlu0 %658
    %v660 = vsel %vm105, %v659, 0
    %662 = vmatpush.msra.mxu0 0.0
    %663 = vmatpush.msra.mxu0 0.0
    %664 = vmatpush.msra.mxu0 0.0
    %665 = vmatpush.msra.mxu0 0.0
    %666 = vmatpush.msra.mxu0 0.0
    %667 = vmatpush.msra.mxu0 0.0
    %668 = vmatpush.msra.mxu0 0.0
    %669 = vmatpush.msra.mxu0 0.0
    %670 = vmatpush.msra.mxu0 0.0
    %671 = vmatpush.msra.mxu0 0.0
    %672 = vmatpush.msra.mxu0 0.0
    %673 = vmatpush.msra.mxu0 0.0
    %674 = vmatpush.msra.mxu0 %v104
    %675 = vmatpush.msra.mxu0 %v103
    %676 = vmatpush.msra.mxu0 %v102
    %677 = vmatpush.msra.mxu0 %v101
    %678 = vmatmul.f32.gmra.mxu0 %v660
    %v679 = vpop.f32.mrf.mxu0
    %v680 = vadd.f32 0.0, %v679
    %681 = vdwg.mxu0
    %683 = vrot.lane.b32.xlu0 %v680, 112
    %v684 = vpop.permute.xlu0 %683
    %v686 = vadd.f32 %v591, %v684
    %v687 = vrot.slane %v680, 1
    %688 = vrot.lane.b32.xlu0 %v687, 104
    %v689 = vpop.permute.xlu0 %688
    %v691 = vadd.f32 %v686, %v689
    %692 = vmatpush.msra.mxu0 0.0
    %693 = vmatpush.msra.mxu0 0.0
    %694 = vmatpush.msra.mxu0 0.0
    %695 = vmatpush.msra.mxu0 0.0
    %696 = vmatpush.msra.mxu0 0.0
    %697 = vmatpush.msra.mxu0 0.0
    %698 = vmatpush.msra.mxu0 0.0
    %699 = vmatpush.msra.mxu0 0.0
    %700 = vmatpush.msra.mxu0 0.0
    %701 = vmatpush.msra.mxu0 0.0
    %702 = vmatpush.msra.mxu0 0.0
    %703 = vmatpush.msra.mxu0 0.0
    %704 = vmatpush.msra.mxu0 %v100
    %705 = vmatpush.msra.mxu0 %v99
    %706 = vmatpush.msra.mxu0 %v98
    %707 = vmatpush.msra.mxu0 %v97
    %708 = vmatmul.f32.gmra.mxu0 %v660
    %v709 = vpop.f32.mrf.mxu0
    %v710 = vadd.f32 0.0, %v709
    %711 = vdwg.mxu0
    %v713 = vrot.slane %v710, 4
    %v715 = vadd.f32 %v95, %v713
    %v716 = vxor.u32 %v715, 2147483648
    %v717 = vmul.f32 %v716, 1.442695
    %v718 = vpow.pop %v717
    %v719 = vadd.f32 %v718, 1.0
    %v720 = vrcp.pop %v719
    %v721 = vmul.f32 %v719, %v720
    %v722 = vsub.f32 1.0, %v721
    %v723 = vmul.f32 %v720, %v722
    %v724 = vadd.f32 %v720, %v723
    %vm725 = vweird.f32 %v719
    %vm726 = vweird.f32 %v720
    %vm727 = vmor %vm725, %vm726
    %v728 = vsel %vm727, %v720, %v724
    %v729 = vand.u32 2147483647, %v719
    %vm730 = vcmp.eq.f32.partialorder %v729, 8.507059e+37
    %v731 = vand.u32 %v719, 2147483648
    %v732 = vor.u32 1.1754944e-38, %v731
    %v733 = vsel %vm730, %v732, %v728
    %v734 = vmul.f32 1.0, %v733
    %v735 = vtanh.pop %v715
    %v737 = vrot.slane %v649, 6
    %v739 = vmul.f32 %v734, %v737
    %741 = vrot.lane.b32.xlu0 %v735, 64
    %v742 = vpop.permute.xlu0 %741
    %v744 = vmul.f32 %v734, %v742
    %746 = vrot.lane.b32.xlu0 %v744, 32
    %v747 = vpop.permute.xlu0 %746
    %v749 = vadd.f32 %v739, %v747
    %v750 = vtanh.pop %v749
    %752 = vrot.lane.b32.xlu0 %v750, 64
    %v753 = vpop.permute.xlu0 %752
    %v755 = vmul.f32 %v734, %v753
    %v757 = vrot.slane %v755, 4
    %758 = vrot.lane.b32.xlu0 %v757, 32
    %v759 = vpop.permute.xlu0 %758
    %v760 = vsel %vm105, %v759, 0
    %762 = vmatpush.msra.mxu0 0.0
    %763 = vmatpush.msra.mxu0 0.0
    %764 = vmatpush.msra.mxu0 0.0
    %765 = vmatpush.msra.mxu0 0.0
    %766 = vmatpush.msra.mxu0 0.0
    %767 = vmatpush.msra.mxu0 0.0
    %768 = vmatpush.msra.mxu0 0.0
    %769 = vmatpush.msra.mxu0 0.0
    %770 = vmatpush.msra.mxu0 0.0
    %771 = vmatpush.msra.mxu0 0.0
    %772 = vmatpush.msra.mxu0 0.0
    %773 = vmatpush.msra.mxu0 0.0
    %774 = vmatpush.msra.mxu0 %v104
    %775 = vmatpush.msra.mxu0 %v103
    %776 = vmatpush.msra.mxu0 %v102
    %777 = vmatpush.msra.mxu0 %v101
    %778 = vmatmul.f32.gmra.mxu0 %v760
    %v779 = vpop.f32.mrf.mxu0
    %v780 = vadd.f32 0.0, %v779
    %781 = vdwg.mxu0
    %783 = vrot.lane.b32.xlu0 %v780, 96
    %v784 = vpop.permute.xlu0 %783
    %v786 = vadd.f32 %v691, %v784
    %v787 = vrot.slane %v780, 1
    %788 = vrot.lane.b32.xlu0 %v787, 88
    %v789 = vpop.permute.xlu0 %788
    %v791 = vadd.f32 %v786, %v789
    %792 = vmatpush.msra.mxu0 0.0
    %793 = vmatpush.msra.mxu0 0.0
    %794 = vmatpush.msra.mxu0 0.0
    %795 = vmatpush.msra.mxu0 0.0
    %796 = vmatpush.msra.mxu0 0.0
    %797 = vmatpush.msra.mxu0 0.0
    %798 = vmatpush.msra.mxu0 0.0
    %799 = vmatpush.msra.mxu0 0.0
    %800 = vmatpush.msra.mxu0 0.0
    %801 = vmatpush.msra.mxu0 0.0
    %802 = vmatpush.msra.mxu0 0.0
    %803 = vmatpush.msra.mxu0 0.0
    %804 = vmatpush.msra.mxu0 %v100
    %805 = vmatpush.msra.mxu0 %v99
    %806 = vmatpush.msra.mxu0 %v98
    %807 = vmatpush.msra.mxu0 %v97
    %808 = vmatmul.f32.gmra.mxu0 %v760
    %v809 = vpop.f32.mrf.mxu0
    %v810 = vadd.f32 0.0, %v809
    %811 = vdwg.mxu0
    %v813 = vrot.slane %v810, 2
    %v815 = vadd.f32 %v95, %v813
    %v816 = vxor.u32 %v815, 2147483648
    %v817 = vmul.f32 %v816, 1.442695
    %v818 = vpow.pop %v817
    %v819 = vadd.f32 %v818, 1.0
    %v820 = vrcp.pop %v819
    %v821 = vmul.f32 %v819, %v820
    %v822 = vsub.f32 1.0, %v821
    %v823 = vmul.f32 %v820, %v822
    %v824 = vadd.f32 %v820, %v823
    %vm825 = vweird.f32 %v819
    %vm826 = vweird.f32 %v820
    %vm827 = vmor %vm825, %vm826
    %v828 = vsel %vm827, %v820, %v824
    %v829 = vand.u32 2147483647, %v819
    %vm830 = vcmp.eq.f32.partialorder %v829, 8.507059e+37
    %v831 = vand.u32 %v819, 2147483648
    %v832 = vor.u32 1.1754944e-38, %v831
    %v833 = vsel %vm830, %v832, %v828
    %v834 = vmul.f32 1.0, %v833
    %v835 = vtanh.pop %v815
    %v837 = vrot.slane %v749, 6
    %v839 = vmul.f32 %v834, %v837
    %841 = vrot.lane.b32.xlu0 %v835, 64
    %v842 = vpop.permute.xlu0 %841
    %v844 = vmul.f32 %v834, %v842
    %846 = vrot.lane.b32.xlu0 %v844, 32
    %v847 = vpop.permute.xlu0 %846
    %v849 = vadd.f32 %v839, %v847
    %v850 = vtanh.pop %v849
    %852 = vrot.lane.b32.xlu0 %v850, 64
    %v853 = vpop.permute.xlu0 %852
    %v855 = vmul.f32 %v834, %v853
    %v857 = vrot.slane %v855, 6
    %858 = vrot.lane.b32.xlu0 %v857, 32
    %v859 = vpop.permute.xlu0 %858
    %v860 = vsel %vm105, %v859, 0
    %862 = vmatpush.msra.mxu0 0.0
    %863 = vmatpush.msra.mxu0 0.0
    %864 = vmatpush.msra.mxu0 0.0
    %865 = vmatpush.msra.mxu0 0.0
    %866 = vmatpush.msra.mxu0 0.0
    %867 = vmatpush.msra.mxu0 0.0
    %868 = vmatpush.msra.mxu0 0.0
    %869 = vmatpush.msra.mxu0 0.0
    %870 = vmatpush.msra.mxu0 0.0
    %871 = vmatpush.msra.mxu0 0.0
    %872 = vmatpush.msra.mxu0 0.0
    %873 = vmatpush.msra.mxu0 0.0
    %874 = vmatpush.msra.mxu0 %v104
    %875 = vmatpush.msra.mxu0 %v103
    %876 = vmatpush.msra.mxu0 %v102
    %877 = vmatpush.msra.mxu0 %v101
    %878 = vmatmul.f32.gmra.mxu0 %v860
    %v879 = vpop.f32.mrf.mxu0
    %v880 = vadd.f32 0.0, %v879
    %881 = vdwg.mxu0
    %883 = vrot.lane.b32.xlu0 %v880, 80
    %v884 = vpop.permute.xlu0 %883
    %v886 = vadd.f32 %v791, %v884
    %v887 = vrot.slane %v880, 1
    %888 = vrot.lane.b32.xlu0 %v887, 72
    %v889 = vpop.permute.xlu0 %888
    %v891 = vadd.f32 %v886, %v889
    %v893 = vrot.slane %v891, 7
    %894 = vrot.lane.b32.xlu0 %v893, 64
    %v895 = vpop.permute.xlu0 %894
    %vm897 = vcmask 1040384
    %v898 = vsel %vm897, %v498, %v895
    %v899 = vld [vmem:[%s5] sm:$0x1]
    %v901 = vperm.slane %v899, 0
    %v903 = vadd.f32 %v898, %v901
    %vm904 = vcmask 58368
    %905 = vst.msk [vmem:[#allocation7] sm:$0x3] %vm904, %v903
    // Predicated region
    $region34: #{lie_lstm_forward.1} parent=1 // pred_check
      _
    $region35: #{lie_lstm_forward.1} parent=1 // pred_check_branch
      %907 = sbr.rel (0) target = $region37
    $region36: #{lie_lstm_forward.1} parent=1 // pred_region
      %909 = vsyncadd [#allocation4], 0
      %s911 = sshll.u32 [#allocation7], 4
      %s912 = int_to_ptr.vmem [resolvable:$true] %s911
      %s913 = sshll.u32 %s6, 4
      %s914 = int_to_ptr.hbm [resolvable:$true] %s913
      %916 = dma.vmem_to_hbm [thread:$0]  %s912, 32, %s914, [#allocation4]
    $region37: #{lie_lstm_forward.1} parent=1 // pred_fallthru
      _
    // Predicated region
    $region38: #{lie_lstm_forward.1} parent=1 // pred_check
      _
    $region39: #{lie_lstm_forward.1} parent=1 // pred_check_branch
      %918 = sbr.rel (0) target = $region41
    $region40: #{lie_lstm_forward.1} parent=1 // pred_region
      %920 = dma.done [#allocation4], 32
    $region41: #{lie_lstm_forward.1} parent=1 // pred_fallthru
      _
    %921 = vsyncpa [#allocation3], 1
    %922 = vsyncpa [#allocation6], 1
    %923 = vsyncpa [#allocation4], 1

</llo_original>
